<compile_context>
chip_gen: v5e
topology: v5e:2x2
jax: 0.10.0
libtpu: 0.0.40
codegen_flags: <defaults>
</compile_context>

<pallas_src>
import functools
import math

import jax
import jax.numpy as jnp
from jax.experimental import pallas as pl
from jax.experimental.pallas import tpu as pltpu


def _mha_pool_kernel(x_ref, wqk_ref, bqk_ref, wv_ref, bv_ref, hmask_ref,
                     wo_ref, bo_ref, o_ref, *, b_tile, seq, d_model, n_heads, n_q):
    """Multi-head cross-attention pooling for one batch tile.

    x_ref     : [Bt, S, D]   f32   keys/values source (cast to bf16 in-kernel)
    wqk_ref   : [D, H*L]     bf16  fused Wk^T @ Qexp (K-proj + Q-proj + head select + scale)
    bqk_ref   : [1, H*L]     f32   fused score bias
    wv_ref    : [D, D]       bf16  Wv^T
    bv_ref    : [1, D]       f32
    hmask_ref : [H*L, D]     f32   hmask[h*L+l, d] = 1 iff value-dim d belongs to head h
    wo_ref    : [D, D]       bf16  out_proj weight, transposed (in -> out)
    bo_ref    : [1, D]       f32
    o_ref     : [Bt, L, D]   f32
    """
    Bt, S, D, H, L = b_tile, seq, d_model, n_heads, n_q
    HL = H * L

    # One bf16 view of the activation block, flattened across the batch tile so
    # every matmul below runs with M = Bt*S (or Bt*L) instead of per-b tiles.
    xb = x_ref[...].astype(jnp.bfloat16).reshape(Bt * S, D)

    # Scores for every (head, query) pair in ONE lane-dense matmul.
    s = jnp.dot(xb, wqk_ref[...], preferred_element_type=jnp.float32) + bqk_ref[...]
    s3 = s.reshape(Bt, S, HL)                       # split batch off the sublane axis

    # Softmax over S (kept in f32; exp/recip never in bf16).
    m = jnp.max(s3, axis=1, keepdims=True)
    e = jnp.exp(s3 - m)
    denom = jnp.sum(e, axis=1, keepdims=True)
    p = e * pl.reciprocal(denom, approx=True)       # [Bt, S, HL] f32

    # Value projection for the whole tile (single matmul, f32 accumulate).
    v = jnp.dot(xb, wv_ref[...], preferred_element_type=jnp.float32) + bv_ref[...]
    v3 = v.astype(jnp.bfloat16).reshape(Bt, S, D)

    # Joint PV product for all (head, query) rows at once: contraction over S,
    # batched over the batch tile.  Result [Bt, H*L, D] in f32.
    pv = jax.lax.dot_general(p.astype(jnp.bfloat16), v3,
                             (((1,), (1,)), ((0,), (0,))),
                             preferred_element_type=jnp.float32)

    # Per-head selection with a dense 0/1 mask (full-width VPU multiply, no
    # sub-vreg lane slicing), then reduce the head axis.  The head groups sit on
    # sublane-aligned blocks of size L, so these are cheap whole-vreg adds.
    masked = pv * hmask_ref[...]                    # [Bt, HL, D]
    ctx = masked[:, 0:L, :]
    for h in range(1, H):
        ctx = ctx + masked[:, h * L:(h + 1) * L, :]  # [Bt, L, D] f32

    # Output projection over the whole tile + one full block store.
    out = jnp.dot(ctx.reshape(Bt * L, D).astype(jnp.bfloat16), wo_ref[...],
                  preferred_element_type=jnp.float32) + bo_ref[...]
    o_ref[...] = out.reshape(Bt, L, D).astype(o_ref.dtype)


def _num_tensorcores_per_chip():
    """Crude generation sniff: v7x has 2 TensorCores per chip, v5e/v6e have 1."""
    try:
        kind = jax.devices()[0].device_kind.lower()
    except Exception:
        return 1
    return 2 if ("v7" in kind or "7x" in kind) else 1


def _choose_batch_tile(B, S, L, D, num_cores, *, act_budget_bytes=24 * 2 ** 20):
    """Largest divisor of B whose double-buffered f32 activation blocks fit the
    budget; on multi-TC chips keep >= num_cores grid steps so both cores work."""
    per_b = 2 * (S * D + L * D) * 4                 # double-buffered x + out, f32
    cap = max(1, act_budget_bytes // per_b)
    best = 1
    for bt in range(1, B + 1):
        if B % bt or bt > cap:
            continue
        if num_cores > 1 and B >= num_cores and (B // bt) < num_cores:
            continue
        best = bt
    return best


def _vmem_estimate_bytes(bt, S, L, D, H):
    hl = H * L
    act = bt * S * D * 4 + bt * L * D * 4                       # x block + out block (f32)
    wts = (D * hl + 2 * D * D) * 2 + (hl + 2 * D) * 4 + hl * D * 4
    return 2 * (act + wts)                                      # default double buffering


def pack_params(params, *, num_heads=8):
    """One-time weight packing (call once, outside the per-forward path)."""
    queries = params["queries"]                    # [L, D]
    in_w = params["in_proj_weight"]                # [3D, D]
    in_b = params["in_proj_bias"]                  # [3D]
    wo_full = params["out_proj_weight"]            # [D, D]
    bo_full = params["out_proj_bias"]              # [D]

    L, D = queries.shape
    H = num_heads
    hd = D // H
    assert hd * H == D
    scale = 1.0 / math.sqrt(hd)

    wq, wk, wv = in_w[:D], in_w[D:2 * D], in_w[2 * D:]
    bq, bk, bv = in_b[:D], in_b[D:2 * D], in_b[2 * D:]

    # Batch-invariant query projection (hoisted out of the kernel).
    q_proj = queries @ wq.T + bq                   # [L, D] f32

    head_of_dim = jnp.arange(D) // hd              # head owning each feature dim
    col = jnp.arange(H * L)
    col_head = col // L                            # score column -> head
    # Qexp[d, h*L + l] = scale * q_proj[l, d] * [d in head h]
    qexp = (scale * jnp.tile(q_proj.T, (1, H))
            * (head_of_dim[:, None] == col_head[None, :]).astype(jnp.float32))  # [D, HL]

    # Fused "x -> per-(head, query) score" projection: folds the K projection in.
    wqk = wk.T @ qexp                              # [D, HL]
    bqk = (bk @ qexp)[None, :]                     # [1, HL]

    # Head-selection mask for the joint PV product.
    hmask = (col_head[:, None] == head_of_dim[None, :]).astype(jnp.float32)     # [HL, D]

    return {
        "wqk": wqk.astype(jnp.bfloat16),
        "bqk": bqk.astype(jnp.float32),
        "wv": wv.T.astype(jnp.bfloat16),           # [D, D]
        "bv": bv[None, :].astype(jnp.float32),     # [1, D]
        "hmask": hmask,                            # [HL, D] f32
        "wo": wo_full.T.astype(jnp.bfloat16),      # [D, D]
        "bo": bo_full[None, :].astype(jnp.float32),
        "num_heads": H,
        "num_queries": L,
    }


def audio_compressor_forward(x, packed, *, batch_tile=None, vmem_limit_bytes=None):
    """x: [B, S, D] float32, packed = pack_params(...) -> compressed [B, L, D] f32."""
    B, S, D = x.shape
    H = packed["num_heads"]
    L = packed["num_queries"]
    HL = H * L

    if batch_tile is None:
        batch_tile = _choose_batch_tile(B, S, L, D, _num_tensorcores_per_chip())
    assert B % batch_tile == 0
    grid = (B // batch_tile,)

    if vmem_limit_bytes is None:
        est = _vmem_estimate_bytes(batch_tile, S, L, D, H)
        vmem_limit_bytes = int(min(48 * 2 ** 20, max(32 * 2 ** 20, 2 * est)))

    kernel = functools.partial(_mha_pool_kernel, b_tile=batch_tile, seq=S,
                               d_model=D, n_heads=H, n_q=L)

    return pl.pallas_call(
        kernel,
        out_shape=jax.ShapeDtypeStruct((B, L, D), jnp.float32),
        grid_spec=pltpu.PrefetchScalarGridSpec(
            num_scalar_prefetch=0,
            grid=grid,
            in_specs=[
                pl.BlockSpec((batch_tile, S, D), lambda i: (i, 0, 0)),  # x (f32)
                pl.BlockSpec((D, HL), lambda i: (0, 0)),                # wqk (bf16)
                pl.BlockSpec((1, HL), lambda i: (0, 0)),                # bqk
                pl.BlockSpec((D, D), lambda i: (0, 0)),                 # wv^T (bf16)
                pl.BlockSpec((1, D), lambda i: (0, 0)),                 # bv
                pl.BlockSpec((HL, D), lambda i: (0, 0)),                # head mask
                pl.BlockSpec((D, D), lambda i: (0, 0)),                 # wo^T (bf16)
                pl.BlockSpec((1, D), lambda i: (0, 0)),                 # bo
            ],
            out_specs=pl.BlockSpec((batch_tile, L, D), lambda i: (i, 0, 0)),
        ),
        compiler_params=pltpu.CompilerParams(
            dimension_semantics=("parallel",),
            vmem_limit_bytes=vmem_limit_bytes),
    )(x, packed["wqk"], packed["bqk"], packed["wv"], packed["bv"],
      packed["hmask"], packed["wo"], packed["bo"])


def reference_forward(x, params, *, num_heads=8):
    """Plain-JAX reference reproducing torch.nn.MultiheadAttention semantics."""
    B, S, D = x.shape
    queries = params["queries"]
    L = queries.shape[0]
    hd = D // num_heads
    in_w, in_b = params["in_proj_weight"], params["in_proj_bias"]
    wo, bo = params["out_proj_weight"], params["out_proj_bias"]

    q_in = jnp.broadcast_to(queries[None], (B, L, D))
    q = q_in @ in_w[:D].T + in_b[:D]
    k = x @ in_w[D:2 * D].T + in_b[D:2 * D]
    v = x @ in_w[2 * D:].T + in_b[2 * D:]

    def split(t, n):
        return t.reshape(B, n, num_heads, hd).transpose(0, 2, 1, 3)

    qh, kh, vh = split(q, L), split(k, S), split(v, S)
    s = jnp.einsum("bhld,bhsd->bhls", qh, kh) / math.sqrt(hd)
    p = jax.nn.softmax(s, axis=-1)
    oh = jnp.einsum("bhls,bhsd->bhld", p, vh)
    o = oh.transpose(0, 2, 1, 3).reshape(B, L, D)
    return o @ wo.T + bo


def init_params(key, input_dim, output_seq_len):
    ks = jax.random.split(key, 5)
    s = 0.1
    return {
        "queries": jax.random.normal(ks[0], (output_seq_len, input_dim), jnp.float32),
        "in_proj_weight": s * jax.random.normal(ks[1], (3 * input_dim, input_dim), jnp.float32),
        "in_proj_bias": s * jax.random.normal(ks[2], (3 * input_dim,), jnp.float32),
        "out_proj_weight": s * jax.random.normal(ks[3], (input_dim, input_dim), jnp.float32),
        "out_proj_bias": s * jax.random.normal(ks[4], (input_dim,), jnp.float32),
    }


if __name__ == "__main__":
    B, S, D = 2, 16, 32          # batch, input seq_len, input_dim (8 heads -> head_dim 4)
    L = 8                        # output_seq_len

    key = jax.random.PRNGKey(0)
    kx, kp = jax.random.split(key)
    x = jax.random.normal(kx, (B, S, D), jnp.float32)
    params = init_params(kp, D, L)

    packed = pack_params(params, num_heads=8)      # one-time weight packing

    out = jax.block_until_ready(audio_compressor_forward(x, packed))

    ref = reference_forward(x, params, num_heads=8)
    assert out.shape == (B, L, D)
    err = jnp.max(jnp.abs(out - ref))
    assert jnp.allclose(out, ref, rtol=1e-2, atol=1e-2), f"max abs err {err}"

    print("KERNEL_OK")
</pallas_src>

<mosaic_0001>
module attributes {stable_mosaic.version = 11 : i64} {
  func.func @_mha_pool_kernel(%arg0: i32, %arg1: memref<2x16x32xf32, #tpu.memory_space<vmem>>, %arg2: memref<32x64xbf16, #tpu.memory_space<vmem>>, %arg3: memref<1x64xf32, #tpu.memory_space<vmem>>, %arg4: memref<32x32xbf16, #tpu.memory_space<vmem>>, %arg5: memref<1x32xf32, #tpu.memory_space<vmem>>, %arg6: memref<64x32xf32, #tpu.memory_space<vmem>>, %arg7: memref<32x32xbf16, #tpu.memory_space<vmem>>, %arg8: memref<1x32xf32, #tpu.memory_space<vmem>>, %arg9: memref<2x8x32xf32, #tpu.memory_space<vmem>>) attributes {dimension_semantics = [#tpu.dimension_semantics<parallel>], iteration_bounds = array<i64: 1>, scalar_prefetch = 0 : i64, scratch_operands = 0 : i64, tpu.core_type = #tpu.core_type<tc>, window_params = [{transform_indices = @transform_0, window_bounds = array<i64: 2, 16, 32>}, {pipeline_mode = #tpu.pipeline_mode<synchronous>, transform_indices = @transform_1, window_bounds = array<i64: 32, 64>}, {pipeline_mode = #tpu.pipeline_mode<synchronous>, transform_indices = @transform_2, window_bounds = array<i64: 1, 64>}, {pipeline_mode = #tpu.pipeline_mode<synchronous>, transform_indices = @transform_3, window_bounds = array<i64: 32, 32>}, {pipeline_mode = #tpu.pipeline_mode<synchronous>, transform_indices = @transform_4, window_bounds = array<i64: 1, 32>}, {pipeline_mode = #tpu.pipeline_mode<synchronous>, transform_indices = @transform_5, window_bounds = array<i64: 64, 32>}, {pipeline_mode = #tpu.pipeline_mode<synchronous>, transform_indices = @transform_6, window_bounds = array<i64: 32, 32>}, {pipeline_mode = #tpu.pipeline_mode<synchronous>, transform_indices = @transform_7, window_bounds = array<i64: 1, 32>}, {transform_indices = @transform_8, window_bounds = array<i64: 2, 8, 32>}]} {
    %c0 = arith.constant 0 : index
    %c0_0 = arith.constant 0 : index
    %c0_1 = arith.constant 0 : index
    %0 = vector.load %arg1[%c0, %c0_0, %c0_1] : memref<2x16x32xf32, #tpu.memory_space<vmem>>, vector<2x16x32xf32>
    %1 = arith.truncf %0 : vector<2x16x32xf32> to vector<2x16x32xbf16>
    %2 = vector.shape_cast %1 : vector<2x16x32xbf16> to vector<32x32xbf16>
    %c0_2 = arith.constant 0 : index
    %c0_3 = arith.constant 0 : index
    %3 = vector.load %arg2[%c0_2, %c0_3] : memref<32x64xbf16, #tpu.memory_space<vmem>>, vector<32x64xbf16>
    %cst = arith.constant dense<0.000000e+00> : vector<32x64xf32>
    %4 = tpu.matmul %2, %3, %cst {dimension_numbers = #tpu.dot_dimension_numbers<[1], [0], [0], [1], [0, 0, 1, 1], [], []>} : vector<32x32xbf16>, vector<32x64xbf16>, vector<32x64xf32> -> vector<32x64xf32>
    %c0_4 = arith.constant 0 : index
    %c0_5 = arith.constant 0 : index
    %5 = vector.load %arg3[%c0_4, %c0_5] : memref<1x64xf32, #tpu.memory_space<vmem>>, vector<1x64xf32>
    %6 = vector.broadcast %5 : vector<1x64xf32> to vector<32x64xf32>
    %7 = arith.addf %4, %6 : vector<32x64xf32>
    %8 = vector.shape_cast %7 : vector<32x64xf32> to vector<2x16x64xf32>
    %cst_6 = arith.constant dense<0xFF800000> : vector<2x64xf32>
    %9 = vector.multi_reduction <maximumf>, %8, %cst_6 [1] : vector<2x16x64xf32> to vector<2x64xf32>
    %10 = vector.shape_cast %9 : vector<2x64xf32> to vector<2x1x64xf32>
    %11 = vector.broadcast %10 : vector<2x1x64xf32> to vector<2x16x64xf32>
    %12 = arith.subf %8, %11 : vector<2x16x64xf32>
    %13 = math.exp %12 : vector<2x16x64xf32>
    %cst_7 = arith.constant dense<0.000000e+00> : vector<2x64xf32>
    %14 = vector.multi_reduction <add>, %13, %cst_7 [1] : vector<2x16x64xf32> to vector<2x64xf32>
    %15 = vector.shape_cast %14 : vector<2x64xf32> to vector<2x1x64xf32>
    %16 = tpu.reciprocal %15 {approx = true} : vector<2x1x64xf32> -> vector<2x1x64xf32>
    %17 = vector.broadcast %16 : vector<2x1x64xf32> to vector<2x16x64xf32>
    %18 = arith.mulf %13, %17 : vector<2x16x64xf32>
    %c0_8 = arith.constant 0 : index
    %c0_9 = arith.constant 0 : index
    %19 = vector.load %arg4[%c0_8, %c0_9] : memref<32x32xbf16, #tpu.memory_space<vmem>>, vector<32x32xbf16>
    %cst_10 = arith.constant dense<0.000000e+00> : vector<32x32xf32>
    %20 = tpu.matmul %2, %19, %cst_10 {dimension_numbers = #tpu.dot_dimension_numbers<[1], [0], [0], [1], [0, 0, 1, 1], [], []>} : vector<32x32xbf16>, vector<32x32xbf16>, vector<32x32xf32> -> vector<32x32xf32>
    %c0_11 = arith.constant 0 : index
    %c0_12 = arith.constant 0 : index
    %21 = vector.load %arg5[%c0_11, %c0_12] : memref<1x32xf32, #tpu.memory_space<vmem>>, vector<1x32xf32>
    %22 = vector.broadcast %21 : vector<1x32xf32> to vector<32x32xf32>
    %23 = arith.addf %20, %22 : vector<32x32xf32>
    %24 = arith.truncf %23 : vector<32x32xf32> to vector<32x32xbf16>
    %25 = vector.shape_cast %24 : vector<32x32xbf16> to vector<2x16x32xbf16>
    %26 = arith.truncf %18 : vector<2x16x64xf32> to vector<2x16x64xbf16>
    %cst_13 = arith.constant dense<0.000000e+00> : vector<2x64x32xf32>
    %27 = tpu.matmul %26, %25, %cst_13 {dimension_numbers = #tpu.dot_dimension_numbers<[1], [1], [2], [2], [0, 0, 0, 2, 1, 2], [0], [0]>} : vector<2x16x64xbf16>, vector<2x16x32xbf16>, vector<2x64x32xf32> -> vector<2x64x32xf32>
    %c0_14 = arith.constant 0 : index
    %c0_15 = arith.constant 0 : index
    %28 = vector.load %arg6[%c0_14, %c0_15] : memref<64x32xf32, #tpu.memory_space<vmem>>, vector<64x32xf32>
    %29 = vector.shape_cast %28 : vector<64x32xf32> to vector<1x64x32xf32>
    %30 = vector.broadcast %29 : vector<1x64x32xf32> to vector<2x64x32xf32>
    %31 = arith.mulf %27, %30 : vector<2x64x32xf32>
    %32 = vector.extract_strided_slice %31 {offsets = [0, 0, 0], sizes = [2, 8, 32], strides = [1, 1, 1]} : vector<2x64x32xf32> to vector<2x8x32xf32>
    %33 = vector.extract_strided_slice %31 {offsets = [0, 8, 0], sizes = [2, 8, 32], strides = [1, 1, 1]} : vector<2x64x32xf32> to vector<2x8x32xf32>
    %34 = arith.addf %32, %33 : vector<2x8x32xf32>
    %35 = vector.extract_strided_slice %31 {offsets = [0, 16, 0], sizes = [2, 8, 32], strides = [1, 1, 1]} : vector<2x64x32xf32> to vector<2x8x32xf32>
    %36 = arith.addf %34, %35 : vector<2x8x32xf32>
    %37 = vector.extract_strided_slice %31 {offsets = [0, 24, 0], sizes = [2, 8, 32], strides = [1, 1, 1]} : vector<2x64x32xf32> to vector<2x8x32xf32>
    %38 = arith.addf %36, %37 : vector<2x8x32xf32>
    %39 = vector.extract_strided_slice %31 {offsets = [0, 32, 0], sizes = [2, 8, 32], strides = [1, 1, 1]} : vector<2x64x32xf32> to vector<2x8x32xf32>
    %40 = arith.addf %38, %39 : vector<2x8x32xf32>
    %41 = vector.extract_strided_slice %31 {offsets = [0, 40, 0], sizes = [2, 8, 32], strides = [1, 1, 1]} : vector<2x64x32xf32> to vector<2x8x32xf32>
    %42 = arith.addf %40, %41 : vector<2x8x32xf32>
    %43 = vector.extract_strided_slice %31 {offsets = [0, 48, 0], sizes = [2, 8, 32], strides = [1, 1, 1]} : vector<2x64x32xf32> to vector<2x8x32xf32>
    %44 = arith.addf %42, %43 : vector<2x8x32xf32>
    %45 = vector.extract_strided_slice %31 {offsets = [0, 56, 0], sizes = [2, 8, 32], strides = [1, 1, 1]} : vector<2x64x32xf32> to vector<2x8x32xf32>
    %46 = arith.addf %44, %45 : vector<2x8x32xf32>
    %47 = vector.shape_cast %46 : vector<2x8x32xf32> to vector<16x32xf32>
    %48 = arith.truncf %47 : vector<16x32xf32> to vector<16x32xbf16>
    %c0_16 = arith.constant 0 : index
    %c0_17 = arith.constant 0 : index
    %49 = vector.load %arg7[%c0_16, %c0_17] : memref<32x32xbf16, #tpu.memory_space<vmem>>, vector<32x32xbf16>
    %cst_18 = arith.constant dense<0.000000e+00> : vector<16x32xf32>
    %50 = tpu.matmul %48, %49, %cst_18 {dimension_numbers = #tpu.dot_dimension_numbers<[1], [0], [0], [1], [0, 0, 1, 1], [], []>} : vector<16x32xbf16>, vector<32x32xbf16>, vector<16x32xf32> -> vector<16x32xf32>
    %c0_19 = arith.constant 0 : index
    %c0_20 = arith.constant 0 : index
    %51 = vector.load %arg8[%c0_19, %c0_20] : memref<1x32xf32, #tpu.memory_space<vmem>>, vector<1x32xf32>
    %52 = vector.broadcast %51 : vector<1x32xf32> to vector<16x32xf32>
    %53 = arith.addf %50, %52 : vector<16x32xf32>
    %54 = vector.shape_cast %53 : vector<16x32xf32> to vector<2x8x32xf32>
    %c0_21 = arith.constant 0 : index
    %c0_22 = arith.constant 0 : index
    %c0_23 = arith.constant 0 : index
    %55 = vector.load %arg9[%c0_21, %c0_22, %c0_23] : memref<2x8x32xf32, #tpu.memory_space<vmem>>, vector<2x8x32xf32>
    tpu.vector_store %arg9[%c0_21, %c0_22, %c0_23], %54 {strides = array<i32>} : memref<2x8x32xf32, #tpu.memory_space<vmem>>, vector<2x8x32xf32>,
    return
  }
  func.func @transform_0(%arg0: i32) -> (i32, i32, i32) {
    %c0_i32 = arith.constant 0 : i32
    %c0_i32_0 = arith.constant 0 : i32
    %c0_i32_1 = arith.constant 0 : i32
    return %arg0, %c0_i32, %c0_i32_0 : i32, i32, i32
  }
  func.func @transform_1(%arg0: i32) -> (i32, i32) {
    %c0_i32 = arith.constant 0 : i32
    %c0_i32_0 = arith.constant 0 : i32
    %c0_i32_1 = arith.constant 0 : i32
    return %c0_i32, %c0_i32_0 : i32, i32
  }
  func.func @transform_2(%arg0: i32) -> (i32, i32) {
    %c0_i32 = arith.constant 0 : i32
    %c0_i32_0 = arith.constant 0 : i32
    %c0_i32_1 = arith.constant 0 : i32
    return %c0_i32, %c0_i32_0 : i32, i32
  }
  func.func @transform_3(%arg0: i32) -> (i32, i32) {
    %c0_i32 = arith.constant 0 : i32
    %c0_i32_0 = arith.constant 0 : i32
    %c0_i32_1 = arith.constant 0 : i32
    return %c0_i32, %c0_i32_0 : i32, i32
  }
  func.func @transform_4(%arg0: i32) -> (i32, i32) {
    %c0_i32 = arith.constant 0 : i32
    %c0_i32_0 = arith.constant 0 : i32
    %c0_i32_1 = arith.constant 0 : i32
    return %c0_i32, %c0_i32_0 : i32, i32
  }
  func.func @transform_5(%arg0: i32) -> (i32, i32) {
    %c0_i32 = arith.constant 0 : i32
    %c0_i32_0 = arith.constant 0 : i32
    %c0_i32_1 = arith.constant 0 : i32
    return %c0_i32, %c0_i32_0 : i32, i32
  }
  func.func @transform_6(%arg0: i32) -> (i32, i32) {
    %c0_i32 = arith.constant 0 : i32
    %c0_i32_0 = arith.constant 0 : i32
    %c0_i32_1 = arith.constant 0 : i32
    return %c0_i32, %c0_i32_0 : i32, i32
  }
  func.func @transform_7(%arg0: i32) -> (i32, i32) {
    %c0_i32 = arith.constant 0 : i32
    %c0_i32_0 = arith.constant 0 : i32
    %c0_i32_1 = arith.constant 0 : i32
    return %c0_i32, %c0_i32_0 : i32, i32
  }
  func.func @transform_8(%arg0: i32) -> (i32, i32, i32) {
    %c0_i32 = arith.constant 0 : i32
    %c0_i32_0 = arith.constant 0 : i32
    %c0_i32_1 = arith.constant 0 : i32
    return %arg0, %c0_i32, %c0_i32_0 : i32, i32, i32
  }
}

</mosaic_0001>

<llo_original>
// kernel: tpu_custom_call.1
$region0: #{tpu_custom_call.1}
  #allocation0 [shape = 'u32[]', space=smem, size = 0x4, offset = 0x4, fixed_abs, tag = 'smem constant byte address 0x4 - core index']
  #allocation1 [shape = 'u32[72,128]{1,0:T(1,128)}', space=vmem, size = 0x9000, scoped, tag = 'internal scratch']
  %s0 = inlined_call_operand.vmem [shape: f32[2,16,32], index: 0, kind: input, shape index: {}]
  %s1 = inlined_call_operand.vmem [shape: bf16[32,64], index: 1, kind: input, shape index: {}]
  %s2 = inlined_call_operand.vmem [shape: f32[1,64], index: 2, kind: input, shape index: {}]
  %s3 = inlined_call_operand.vmem [shape: bf16[32,32], index: 3, kind: input, shape index: {}]
  %s4 = inlined_call_operand.vmem [shape: f32[1,32], index: 4, kind: input, shape index: {}]
  %s5 = inlined_call_operand.vmem [shape: f32[64,32], index: 5, kind: input, shape index: {}]
  %s6 = inlined_call_operand.vmem [shape: bf16[32,32], index: 6, kind: input, shape index: {}]
  %s7 = inlined_call_operand.vmem [shape: f32[1,32], index: 7, kind: input, shape index: {}]
  %s8 = inlined_call_operand.hbm [shape: f32[2,8,32], index: 8, kind: output, shape index: {}]
  %s9 = sld [smem:[#allocation0]]
  $region42: #{tpu_custom_call.1} parent=0
    _
  %s11 = ssub.s32 1, %s9
  %s12 = scalar_select 0, %s11, %s9
  $region1: #{tpu_custom_call.1} parent=0
    #allocation2 [shape = 'u8[8192]{0}', space=vmem, size = 0x2000, scoped, tag = 'output window, operand 0, single buffered']
    #allocation3 [shape = 's32[1]{0}', space=sflag, size = 0x4, scoped, tag = 'scoped memory for tpu_custom_call.1']
    %13 = vsyncpa [#allocation3], 0
    // Predicated region
    $region2: #{tpu_custom_call.1} parent=1 // pred_check
      _
    $region3: #{tpu_custom_call.1} parent=1 // pred_check_branch
      %15 = sbr.rel (0) target = $region5
    $region4: #{tpu_custom_call.1} parent=1 // pred_region
      _
    $region5: #{tpu_custom_call.1} parent=1 // pred_fallthru
      _
    // Predicated region
    $region6: #{tpu_custom_call.1} parent=1 // pred_check
      _
    $region7: #{tpu_custom_call.1} parent=1 // pred_check_branch
      %17 = sbr.rel (0) target = $region9
    $region8: #{tpu_custom_call.1} parent=1 // pred_region
      _
    $region9: #{tpu_custom_call.1} parent=1 // pred_fallthru
      _
    // Predicated region
    $region10: #{tpu_custom_call.1} parent=1 // pred_check
      _
    $region11: #{tpu_custom_call.1} parent=1 // pred_check_branch
      %19 = sbr.rel (0) target = $region13
    $region12: #{tpu_custom_call.1} parent=1 // pred_region
      _
    $region13: #{tpu_custom_call.1} parent=1 // pred_fallthru
      _
    // Predicated region
    $region14: #{tpu_custom_call.1} parent=1 // pred_check
      _
    $region15: #{tpu_custom_call.1} parent=1 // pred_check_branch
      %21 = sbr.rel (0) target = $region17
    $region16: #{tpu_custom_call.1} parent=1 // pred_region
      _
    $region17: #{tpu_custom_call.1} parent=1 // pred_fallthru
      _
    // Predicated region
    $region18: #{tpu_custom_call.1} parent=1 // pred_check
      _
    $region19: #{tpu_custom_call.1} parent=1 // pred_check_branch
      %23 = sbr.rel (0) target = $region21
    $region20: #{tpu_custom_call.1} parent=1 // pred_region
      _
    $region21: #{tpu_custom_call.1} parent=1 // pred_fallthru
      _
    // Predicated region
    $region22: #{tpu_custom_call.1} parent=1 // pred_check
      _
    $region23: #{tpu_custom_call.1} parent=1 // pred_check_branch
      %25 = sbr.rel (0) target = $region25
    $region24: #{tpu_custom_call.1} parent=1 // pred_region
      _
    $region25: #{tpu_custom_call.1} parent=1 // pred_fallthru
      _
    // Predicated region
    $region26: #{tpu_custom_call.1} parent=1 // pred_check
      _
    $region27: #{tpu_custom_call.1} parent=1 // pred_check_branch
      %27 = sbr.rel (0) target = $region29
    $region28: #{tpu_custom_call.1} parent=1 // pred_region
      _
    $region29: #{tpu_custom_call.1} parent=1 // pred_fallthru
      _
    // Predicated region
    $region30: #{tpu_custom_call.1} parent=1 // pred_check
      _
    $region31: #{tpu_custom_call.1} parent=1 // pred_check_branch
      %29 = sbr.rel (0) target = $region33
    $region32: #{tpu_custom_call.1} parent=1 // pred_region
      _
    $region33: #{tpu_custom_call.1} parent=1 // pred_fallthru
      _
    %v31 = vld [vmem:[%s0] sm:$0xff]
    %v32 = vld [vmem:[%s0 + $0x8] sm:$0xff]
    %v33 = vld [vmem:[%s0 + $0x10] sm:$0xff]
    %v34 = vld [vmem:[%s0 + $0x18] sm:$0xff]
    %v35 = vpack.c.bf16 %v31, %v31
    %v36 = vpack.c.bf16 %v32, %v32
    %v37 = vpack.c.bf16 %v33, %v33
    %v38 = vpack.c.bf16 %v34, %v34
    %v39 = vld [vmem:[%s1] sm:$0xf]
    %v40 = vld [vmem:[%s1 + $0x4] sm:$0xf]
    %v41 = vld [vmem:[%s1 + $0x8] sm:$0xf]
    %v42 = vld [vmem:[%s1 + $0xc] sm:$0xf]
    %v43 = vld [vmem:[%s2] sm:$0x1]
    %v45 = vperm.slane %v43, 0
    %v51 = vunpack.c.l.b16 %v35
    %v52 = vunpack.c.l.b16 %v36
    %v53 = vunpack.c.l.b16 %v37
    %v54 = vunpack.c.l.b16 %v38
    %v55 = vpack.c.b16 %v52, %v51
    %v56 = vpack.c.b16 %v54, %v53
    %v61 = vunpack.c.l.b16 %v39
    %v62 = vunpack.c.l.b16 %v40
    %v63 = vunpack.c.l.b16 %v41
    %v64 = vunpack.c.l.b16 %v42
    %v65 = vpack.c.b16 %v62, %v61
    %v66 = vpack.c.b16 %v64, %v63
    %vm69 = vcmask 261120
    %v71 = vsel %vm69, %v55, 0
    %v74 = vsel %vm69, %v56, 0
    %76 = vmatpush.bf16.msra.mxu0 0
    %77 = vmatpush.bf16.msra.mxu0 0
    %78 = vmatpush.bf16.msra.mxu0 0
    %79 = vmatpush.bf16.msra.mxu0 0
    %80 = vmatpush.bf16.msra.mxu0 0
    %81 = vmatpush.bf16.msra.mxu0 0
    %82 = vmatpush.bf16.msra.mxu0 %v66
    %83 = vmatpush.bf16.msra.mxu0 %v65
    %84 = vmatmul.bf16.gmra.mxu0 %v71
    %v85 = vpop.f32.mrf.mxu0
    %v86 = vadd.f32 %v45, %v85
    %v87 = vpop.f32.mrf.mxu0
    %v88 = vadd.f32 %v45, %v87
    %89 = vmatmul.bf16.gmra.mxu0 %v74
    %v90 = vpop.f32.mrf.mxu0
    %v91 = vadd.f32 %v45, %v90
    %v92 = vpop.f32.mrf.mxu0
    %v93 = vadd.f32 %v45, %v92
    %94 = vdwg.mxu0
    %vm95 = vcmask 523264
    %v96 = vsel %vm95, %v86, -inf
    %v97 = vsel %vm95, %v88, -inf
    %v98 = vmax.f32 %v96, %v97
    %v99 = vrot.slane %v98, 4
    %v100 = vmax.f32 %v98, %v99
    %v101 = vrot.slane %v100, 2
    %v102 = vmax.f32 %v100, %v101
    %v103 = vrot.slane %v102, 1
    %v104 = vmax.f32 %v102, %v103
    %v105 = vsel %vm95, %v91, -inf
    %v106 = vsel %vm95, %v93, -inf
    %v107 = vmax.f32 %v105, %v106
    %v108 = vrot.slane %v107, 4
    %v109 = vmax.f32 %v107, %v108
    %v110 = vrot.slane %v109, 2
    %v111 = vmax.f32 %v109, %v110
    %v112 = vrot.slane %v111, 1
    %v113 = vmax.f32 %v111, %v112
    %v114 = vsub.f32 %v86, %v104
    %v115 = vsub.f32 %v88, %v104
    %v116 = vsub.f32 %v91, %v113
    %v117 = vsub.f32 %v93, %v113
    %v118 = vmul.f32 %v114, 1.442695
    %v119 = vpow.pop %v118
    %v120 = vmul.f32 %v115, 1.442695
    %v121 = vpow.pop %v120
    %v122 = vmul.f32 %v116, 1.442695
    %v123 = vpow.pop %v122
    %v124 = vmul.f32 %v117, 1.442695
    %v125 = vpow.pop %v124
    %v126 = vsel %vm95, %v119, 0.0
    %v127 = vsel %vm95, %v121, 0.0
    %v128 = vadd.f32 %v126, %v127
    %v129 = vrot.slane %v128, 4
    %v130 = vadd.f32 %v128, %v129
    %v131 = vrot.slane %v130, 2
    %v132 = vadd.f32 %v130, %v131
    %v133 = vrot.slane %v132, 1
    %v134 = vadd.f32 %v132, %v133
    %v135 = vsel %vm95, %v123, 0.0
    %v136 = vsel %vm95, %v125, 0.0
    %v137 = vadd.f32 %v135, %v136
    %v138 = vrot.slane %v137, 4
    %v139 = vadd.f32 %v137, %v138
    %v140 = vrot.slane %v139, 2
    %v141 = vadd.f32 %v139, %v140
    %v142 = vrot.slane %v141, 1
    %v143 = vadd.f32 %v141, %v142
    %v144 = vrcp.pop %v134
    %v145 = vrcp.pop %v143
    %v146 = vmul.f32 %v119, %v144
    %v147 = vmul.f32 %v121, %v144
    %v148 = vmul.f32 %v123, %v145
    %v149 = vmul.f32 %v125, %v145
    %v150 = vld [vmem:[%s3] sm:$0xf]
    %v151 = vld [vmem:[%s3 + $0x4] sm:$0xf]
    %v152 = vld [vmem:[%s3 + $0x8] sm:$0xf]
    %v153 = vld [vmem:[%s3 + $0xc] sm:$0xf]
    %v154 = vld [vmem:[%s4] sm:$0x1]
    %v156 = vperm.slane %v154, 0
    %v162 = vunpack.c.l.b16 %v150
    %v163 = vunpack.c.l.b16 %v151
    %v164 = vunpack.c.l.b16 %v152
    %v165 = vunpack.c.l.b16 %v153
    %v166 = vpack.c.b16 %v163, %v162
    %v167 = vpack.c.b16 %v165, %v164
    %170 = vmatpush.bf16.msra.mxu0 0
    %171 = vmatpush.bf16.msra.mxu0 0
    %172 = vmatpush.bf16.msra.mxu0 0
    %173 = vmatpush.bf16.msra.mxu0 0
    %174 = vmatpush.bf16.msra.mxu0 0
    %175 = vmatpush.bf16.msra.mxu0 0
    %176 = vmatpush.bf16.msra.mxu0 %v167
    %177 = vmatpush.bf16.msra.mxu0 %v166
    %178 = vmatmul.bf16.gmra.mxu0 %v71
    %v179 = vpop.f32.mrf.mxu0
    %v180 = vadd.f32 %v156, %v179
    %v181 = vpop.f32.mrf.mxu0
    %v182 = vadd.f32 %v156, %v181
    %183 = vmatmul.bf16.gmra.mxu0 %v74
    %v184 = vpop.f32.mrf.mxu0
    %v185 = vadd.f32 %v156, %v184
    %v186 = vpop.f32.mrf.mxu0
    %v187 = vadd.f32 %v156, %v186
    %188 = vdwg.mxu0
    %v189 = vpack.c.bf16 %v180, %v180
    %v190 = vpack.c.bf16 %v182, %v182
    %v191 = vpack.c.bf16 %v185, %v185
    %v192 = vpack.c.bf16 %v187, %v187
    %v193 = vpack.c.bf16 %v146, %v146
    %v194 = vpack.c.bf16 %v147, %v147
    %v195 = vpack.c.bf16 %v148, %v148
    %v196 = vpack.c.bf16 %v149, %v149
    %v199 = vunpack.c.l.b16 %v193
    %v200 = vunpack.c.l.b16 %v194
    %v201 = vpack.c.b16 %v200, %v199
    %203 = vxpose.xlu0.c.b16.start [1/8] %v201, 128
    %204 = vxpose.xlu0.c.b16.cont [2/8] 0, 128
    %205 = vxpose.xlu0.c.b16.cont [3/8] 0, 128
    %206 = vxpose.xlu0.c.b16.cont [4/8] 0, 128
    %207 = vxpose.xlu0.c.b16.cont [5/8] 0, 128
    %208 = vxpose.xlu0.c.b16.cont [6/8] 0, 128
    %209 = vxpose.xlu0.c.b16.cont [7/8] 0, 128
    %210 = vxpose.xlu0.c.b16.end [8/8] 0, 128
    %v211 = vpop.trf.xlu0
    %v212 = vpop.trf.xlu0
    %v213 = vpop.trf.xlu0
    %v214 = vpop.trf.xlu0
    %v215 = vpop.trf.xlu0
    %v216 = vpop.trf.xlu0
    %v217 = vpop.trf.xlu0
    %v218 = vpop.trf.xlu0
    %v221 = vunpack.c.l.b16 %v189
    %v222 = vunpack.c.l.b16 %v190
    %v223 = vpack.c.b16 %v222, %v221
    %vm225 = vcmask 130048
    %v227 = vsel %vm225, %v211, 0
    %v230 = vsel %vm225, %v212, 0
    %v233 = vsel %vm225, %v213, 0
    %v236 = vsel %vm225, %v214, 0
    %238 = vmatpush.bf16.msra.mxu0 0
    %239 = vmatpush.bf16.msra.mxu0 0
    %240 = vmatpush.bf16.msra.mxu0 0
    %241 = vmatpush.bf16.msra.mxu0 0
    %242 = vmatpush.bf16.msra.mxu0 0
    %243 = vmatpush.bf16.msra.mxu0 0
    %244 = vmatpush.bf16.msra.mxu0 0
    %245 = vmatpush.bf16.msra.mxu0 %v223
    %246 = vmatmul.bf16.gmra.mxu0 %v227
    %v247 = vpop.f32.mrf.mxu0
    %v248 = vadd.f32 0.0, %v247
    %v249 = vpop.f32.mrf.mxu0
    %v250 = vadd.f32 0.0, %v249
    %251 = vmatmul.bf16.gmra.mxu0 %v230
    %v252 = vpop.f32.mrf.mxu0
    %v253 = vadd.f32 0.0, %v252
    %v254 = vpop.f32.mrf.mxu0
    %v255 = vadd.f32 0.0, %v254
    %256 = vmatmul.bf16.gmra.mxu0 %v233
    %v257 = vpop.f32.mrf.mxu0
    %v258 = vadd.f32 0.0, %v257
    %v259 = vpop.f32.mrf.mxu0
    %v260 = vadd.f32 0.0, %v259
    %261 = vmatmul.bf16.gmra.mxu0 %v236
    %v262 = vpop.f32.mrf.mxu0
    %v263 = vadd.f32 0.0, %v262
    %v264 = vpop.f32.mrf.mxu0
    %v265 = vadd.f32 0.0, %v264
    %266 = vdwg.mxu0
    %v269 = vunpack.c.l.b16 %v195
    %v270 = vunpack.c.l.b16 %v196
    %v271 = vpack.c.b16 %v270, %v269
    %273 = vxpose.xlu0.c.b16.start [1/8] %v271, 128
    %274 = vxpose.xlu0.c.b16.cont [2/8] 0, 128
    %275 = vxpose.xlu0.c.b16.cont [3/8] 0, 128
    %276 = vxpose.xlu0.c.b16.cont [4/8] 0, 128
    %277 = vxpose.xlu0.c.b16.cont [5/8] 0, 128
    %278 = vxpose.xlu0.c.b16.cont [6/8] 0, 128
    %279 = vxpose.xlu0.c.b16.cont [7/8] 0, 128
    %280 = vxpose.xlu0.c.b16.end [8/8] 0, 128
    %v281 = vpop.trf.xlu0
    %v282 = vpop.trf.xlu0
    %v283 = vpop.trf.xlu0
    %v284 = vpop.trf.xlu0
    %v285 = vpop.trf.xlu0
    %v286 = vpop.trf.xlu0
    %v287 = vpop.trf.xlu0
    %v288 = vpop.trf.xlu0
    %v291 = vunpack.c.l.b16 %v191
    %v292 = vunpack.c.l.b16 %v192
    %v293 = vpack.c.b16 %v292, %v291
    %v296 = vsel %vm225, %v281, 0
    %v299 = vsel %vm225, %v282, 0
    %v302 = vsel %vm225, %v283, 0
    %v305 = vsel %vm225, %v284, 0
    %307 = vmatpush.bf16.msra.mxu0 0
    %308 = vmatpush.bf16.msra.mxu0 0
    %309 = vmatpush.bf16.msra.mxu0 0
    %310 = vmatpush.bf16.msra.mxu0 0
    %311 = vmatpush.bf16.msra.mxu0 0
    %312 = vmatpush.bf16.msra.mxu0 0
    %313 = vmatpush.bf16.msra.mxu0 0
    %314 = vmatpush.bf16.msra.mxu0 %v293
    %315 = vmatmul.bf16.gmra.mxu0 %v296
    %v316 = vpop.f32.mrf.mxu0
    %v317 = vadd.f32 0.0, %v316
    %v318 = vpop.f32.mrf.mxu0
    %v319 = vadd.f32 0.0, %v318
    %320 = vmatmul.bf16.gmra.mxu0 %v299
    %v321 = vpop.f32.mrf.mxu0
    %v322 = vadd.f32 0.0, %v321
    %v323 = vpop.f32.mrf.mxu0
    %v324 = vadd.f32 0.0, %v323
    %325 = vmatmul.bf16.gmra.mxu0 %v302
    %v326 = vpop.f32.mrf.mxu0
    %v327 = vadd.f32 0.0, %v326
    %v328 = vpop.f32.mrf.mxu0
    %v329 = vadd.f32 0.0, %v328
    %330 = vmatmul.bf16.gmra.mxu0 %v305
    %v331 = vpop.f32.mrf.mxu0
    %v332 = vadd.f32 0.0, %v331
    %v333 = vpop.f32.mrf.mxu0
    %v334 = vadd.f32 0.0, %v333
    %335 = vdwg.mxu0
    %v336 = vld [vmem:[%s5] sm:$0xff]
    %v337 = vld [vmem:[%s5 + $0x8] sm:$0xff]
    %v338 = vld [vmem:[%s5 + $0x10] sm:$0xff]
    %v339 = vld [vmem:[%s5 + $0x18] sm:$0xff]
    %v340 = vld [vmem:[%s5 + $0x20] sm:$0xff]
    %v341 = vld [vmem:[%s5 + $0x28] sm:$0xff]
    %v342 = vld [vmem:[%s5 + $0x30] sm:$0xff]
    %v343 = vld [vmem:[%s5 + $0x38] sm:$0xff]
    %v344 = vmul.f32 %v248, %v336
    %v345 = vmul.f32 %v250, %v337
    %v346 = vmul.f32 %v253, %v338
    %v347 = vmul.f32 %v255, %v339
    %v348 = vmul.f32 %v258, %v340
    %v349 = vmul.f32 %v260, %v341
    %v350 = vmul.f32 %v263, %v342
    %v351 = vmul.f32 %v265, %v343
    %v352 = vmul.f32 %v317, %v336
    %v353 = vmul.f32 %v319, %v337
    %v354 = vmul.f32 %v322, %v338
    %v355 = vmul.f32 %v324, %v339
    %v356 = vmul.f32 %v327, %v340
    %v357 = vmul.f32 %v329, %v341
    %v358 = vmul.f32 %v332, %v342
    %v359 = vmul.f32 %v334, %v343
    %v360 = vadd.f32 %v344, %v345
    %v361 = vadd.f32 %v352, %v353
    %v362 = vadd.f32 %v360, %v346
    %v363 = vadd.f32 %v361, %v354
    %v364 = vadd.f32 %v362, %v347
    %v365 = vadd.f32 %v363, %v355
    %v366 = vadd.f32 %v364, %v348
    %v367 = vadd.f32 %v365, %v356
    %v368 = vadd.f32 %v366, %v349
    %v369 = vadd.f32 %v367, %v357
    %v370 = vadd.f32 %v368, %v350
    %v371 = vadd.f32 %v369, %v358
    %v372 = vadd.f32 %v370, %v351
    %v373 = vadd.f32 %v371, %v359
    %v374 = vpack.c.bf16 %v373, %v372
    %v375 = vld [vmem:[%s6] sm:$0xf]
    %v376 = vld [vmem:[%s6 + $0x4] sm:$0xf]
    %v377 = vld [vmem:[%s6 + $0x8] sm:$0xf]
    %v378 = vld [vmem:[%s6 + $0xc] sm:$0xf]
    %v379 = vld [vmem:[%s7] sm:$0x1]
    %v381 = vperm.slane %v379, 0
    %v387 = vunpack.c.l.b16 %v375
    %v388 = vunpack.c.l.b16 %v376
    %v389 = vunpack.c.l.b16 %v377
    %v390 = vunpack.c.l.b16 %v378
    %v391 = vpack.c.b16 %v388, %v387
    %v392 = vpack.c.b16 %v390, %v389
    %v396 = vsel %vm69, %v374, 0
    %398 = vmatpush.bf16.msra.mxu0 0
    %399 = vmatpush.bf16.msra.mxu0 0
    %400 = vmatpush.bf16.msra.mxu0 0
    %401 = vmatpush.bf16.msra.mxu0 0
    %402 = vmatpush.bf16.msra.mxu0 0
    %403 = vmatpush.bf16.msra.mxu0 0
    %404 = vmatpush.bf16.msra.mxu0 %v392
    %405 = vmatpush.bf16.msra.mxu0 %v391
    %406 = vmatmul.bf16.gmra.mxu0 %v396
    %v407 = vpop.f32.mrf.mxu0
    %v408 = vadd.f32 %v381, %v407
    %v409 = vpop.f32.mrf.mxu0
    %v410 = vadd.f32 %v381, %v409
    %411 = vdwg.mxu0
    %412 = vst.msk [vmem:[#allocation2] sm:$0xff] %vm69, %v408
    %413 = vst.msk [vmem:[#allocation2 + $0x8] sm:$0xff] %vm69, %v410
    // Predicated region
    $region34: #{tpu_custom_call.1} parent=1 // pred_check
      _
    $region35: #{tpu_custom_call.1} parent=1 // pred_check_branch
      %415 = sbr.rel (0) target = $region37
    $region36: #{tpu_custom_call.1} parent=1 // pred_region
      %417 = vsyncadd [#allocation3], 0
      %s418 = sshll.u32 [#allocation2], 4
      %s419 = int_to_ptr.vmem [resolvable:$true] %s418
      %s420 = sshll.u32 %s8, 4
      %s421 = int_to_ptr.hbm [resolvable:$true] %s420
      %426 = dma.vmem_to_hbm [thread:$0]  %s419, 256, %s421, [#allocation3], 128, 128, 8
    $region37: #{tpu_custom_call.1} parent=1 // pred_fallthru
      _
    // Predicated region
    $region38: #{tpu_custom_call.1} parent=1 // pred_check
      _
    $region39: #{tpu_custom_call.1} parent=1 // pred_check_branch
      %428 = sbr.rel (0) target = $region41
    $region40: #{tpu_custom_call.1} parent=1 // pred_region
      %430 = dma.done [#allocation3], 256
    $region41: #{tpu_custom_call.1} parent=1 // pred_fallthru
      _
    %431 = vsyncpa [#allocation3], 1

</llo_original>
